<compile_context>
chip_gen: v7x
topology: tpu7x:2x2x1
jax: 0.10.0
libtpu: 0.0.40
codegen_flags: <defaults>
</compile_context>

<pallas_src>
from typing import Tuple

import jax
import jax.numpy as jnp
from jax import lax
from jax.experimental import pallas as pl
from jax.experimental.pallas import tpu as pltpu


def _round_up(x: int, m: int) -> int:
    return ((x + m - 1) // m) * m


def _pick_tile(padded_dim: int, cap: int, unit: int) -> int:
    """Largest multiple of `unit` that divides `padded_dim` and is <= cap."""
    best = unit
    t = unit
    limit = min(cap, padded_dim)
    while t <= limit:
        if padded_dim % t == 0:
            best = t
        t += unit
    return best


def _patch_embed_kernel(x_ref, w_ref, b_ref, o_ref, acc_ref):
    # x_ref: (tm, tk)  w_ref: (tn, tk)  b_ref: (1, tn)  o_ref: (tm, tn)
    k = pl.program_id(2)

    @pl.when(k == 0)
    def _():
        acc_ref[...] = jnp.zeros_like(acc_ref)

    # Contract over K with the weight kept in its natural (E, K) layout
    # (avoids a full HBM transpose of W in the wrapper).
    acc_ref[...] += lax.dot_general(
        x_ref[...],
        w_ref[...],
        dimension_numbers=(((1,), (1,)), ((), ())),
        preferred_element_type=jnp.float32,
    )

    @pl.when(k == pl.num_programs(2) - 1)
    def _():
        o_ref[...] = (acc_ref[...] + b_ref[...]).astype(o_ref.dtype)


def image_patch_embedding(
    img: jax.Array,                  # (B, C, H, W)   NCHW, same as PyTorch
    weight: jax.Array,               # (E, C, ph, pw) PyTorch Conv2d weight layout
    bias: jax.Array,                 # (E,)
    num_patch: Tuple[int, int],
    *,
    compute_dtype=jnp.bfloat16,      # MXU-friendly; f32 accumulation inside kernel
) -> jax.Array:                      # (B, npr*npc, E)
    B, C, H, W = img.shape
    E = weight.shape[0]
    npr, npc = num_patch
    assert H % npr == 0 and W % npc == 0
    ph, pw = H // npr, W // npc

    M = B * npr * npc
    K = C * ph * pw

    # Patch extraction: (B,C,npr,ph,npc,pw) -> (B,npr,npc,C,ph,pw) -> (M,K).
    # TODO(synk): for production shapes, fuse this extraction into the kernel
    # via an index_map over (b, patch_row, patch_col) (or store images NHWC)
    # to avoid the extra full HBM read+write here.
    x = img.reshape(B, C, npr, ph, npc, pw)
    x = jnp.transpose(x, (0, 2, 4, 1, 3, 5)).reshape(M, K)

    # Weight stays (E, K): plain reshape, no host transpose / HBM copy.
    w = weight.reshape(E, K)

    # Pad to lane/sublane-friendly sizes; pick tiles that divide exactly.
    Mp = _round_up(M, 16)
    Kp = _round_up(K, 128)
    Ep = _round_up(E, 128)
    tm = _pick_tile(Mp, 256, 16)
    tk = _pick_tile(Kp, 512, 128)
    tn = _pick_tile(Ep, 256, 128)

    x_p = jnp.pad(x, ((0, Mp - M), (0, Kp - K))).astype(compute_dtype)
    w_p = jnp.pad(w, ((0, Ep - E), (0, Kp - K))).astype(compute_dtype)
    b_p = jnp.pad(bias.astype(jnp.float32), (0, Ep - E)).reshape(1, Ep)

    grid = (Mp // tm, Ep // tn, Kp // tk)

    out = pl.pallas_call(
        _patch_embed_kernel,
        out_shape=jax.ShapeDtypeStruct((Mp, Ep), img.dtype),
        grid_spec=pltpu.PrefetchScalarGridSpec(
            num_scalar_prefetch=0,
            grid=grid,
            in_specs=[
                pl.BlockSpec((tm, tk), lambda i, j, k: (i, k)),   # X tile
                pl.BlockSpec((tn, tk), lambda i, j, k: (j, k)),   # W tile (E-major)
                pl.BlockSpec((1, tn), lambda i, j, k: (0, j)),    # bias tile
            ],
            out_specs=pl.BlockSpec((tm, tn), lambda i, j, k: (i, j)),
            scratch_shapes=[pltpu.VMEM((tm, tn), jnp.float32)],
        ),
        compiler_params=pltpu.CompilerParams(
            dimension_semantics=("parallel", "parallel", "arbitrary"),
        ),
    )(x_p, w_p, b_p)

    return out[:M, :E].reshape(B, npr * npc, E)


if __name__ == "__main__":
    # Small shapes consistent with the module:
    #   batch=2, in_channels=4, image_size=(16, 16), num_patch=(4, 4), embed_dim=32
    B, C, H, W = 2, 4, 16, 16
    num_patch = (4, 4)
    E = 32
    ph, pw = H // num_patch[0], W // num_patch[1]

    key = jax.random.PRNGKey(0)
    k_img, k_w, k_b = jax.random.split(key, 3)

    img = jax.random.normal(k_img, (B, C, H, W), dtype=jnp.float32)

    # Deterministic Conv2d-style init: U(-1/sqrt(fan_in), 1/sqrt(fan_in))
    fan_in = C * ph * pw
    bound = 1.0 / (fan_in ** 0.5)
    weight = jax.random.uniform(k_w, (E, C, ph, pw), jnp.float32, -bound, bound)
    bias = jax.random.uniform(k_b, (E,), jnp.float32, -bound, bound)

    # Fast path (bf16 MXU inputs, f32 accumulation) and an f32 path for a tight check.
    out_bf16 = jax.block_until_ready(
        image_patch_embedding(img, weight, bias, num_patch)
    )
    out_f32 = jax.block_until_ready(
        image_patch_embedding(img, weight, bias, num_patch, compute_dtype=jnp.float32)
    )

    # Pure-JAX reference: strided conv (NCHW) -> flatten -> transpose(1, 2)
    ref_conv = jax.lax.conv_general_dilated(
        img, weight,
        window_strides=(ph, pw),
        padding="VALID",
        dimension_numbers=("NCHW", "OIHW", "NCHW"),
    ) + bias.reshape(1, E, 1, 1)
    ref = jnp.transpose(ref_conv.reshape(B, E, -1), (0, 2, 1))

    assert out_bf16.shape == (B, num_patch[0] * num_patch[1], E)
    assert out_f32.shape == (B, num_patch[0] * num_patch[1], E)
    assert jnp.allclose(out_f32, ref, atol=1e-5, rtol=1e-5)
    assert jnp.allclose(out_bf16, ref, atol=2e-2, rtol=2e-2)
    print("KERNEL_OK")
</pallas_src>

<mosaic_0001>
module attributes {stable_mosaic.version = 11 : i64} {
  func.func @_patch_embed_kernel(%arg0: i32, %arg1: i32, %arg2: i32, %arg3: memref<32x128xbf16, #tpu.memory_space<vmem>>, %arg4: memref<128x128xbf16, #tpu.memory_space<vmem>>, %arg5: memref<1x128xf32, #tpu.memory_space<vmem>>, %arg6: memref<32x128xf32, #tpu.memory_space<vmem>>, %arg7: memref<32x128xf32, #tpu.memory_space<vmem>>) attributes {dimension_semantics = [#tpu.dimension_semantics<parallel>, #tpu.dimension_semantics<parallel>, #tpu.dimension_semantics<arbitrary>], iteration_bounds = array<i64: 1, 1, 1>, scalar_prefetch = 0 : i64, scratch_operands = 1 : i64, tpu.core_type = #tpu.core_type<tc>, window_params = [{transform_indices = @transform_0, window_bounds = array<i64: 32, 128>}, {transform_indices = @transform_1, window_bounds = array<i64: 128, 128>}, {transform_indices = @transform_2, window_bounds = array<i64: 1, 128>}, {transform_indices = @transform_3, window_bounds = array<i64: 32, 128>}]} {
    %c0_i32 = arith.constant 0 : i32
    %0 = arith.cmpi eq, %arg2, %c0_i32 : i32
    %1 = arith.extui %0 : i1 to i32
    %c0_i32_0 = arith.constant 0 : i32
    %2 = arith.cmpi ne, %1, %c0_i32_0 : i32
    scf.if %2 {
      %cst_10 = arith.constant 0.000000e+00 : f32
      %12 = vector.broadcast %cst_10 : f32 to vector<32x128xf32>
      %c0_11 = arith.constant 0 : index
      %c0_12 = arith.constant 0 : index
      %13 = vector.load %arg7[%c0_11, %c0_12] : memref<32x128xf32, #tpu.memory_space<vmem>>, vector<32x128xf32>
      tpu.vector_store %arg7[%c0_11, %c0_12], %12 {strides = array<i32>} : memref<32x128xf32, #tpu.memory_space<vmem>>, vector<32x128xf32>,
    } else {
    }
    %c0 = arith.constant 0 : index
    %c0_1 = arith.constant 0 : index
    %3 = vector.load %arg7[%c0, %c0_1] : memref<32x128xf32, #tpu.memory_space<vmem>>, vector<32x128xf32>
    %c0_2 = arith.constant 0 : index
    %c0_3 = arith.constant 0 : index
    %4 = vector.load %arg3[%c0_2, %c0_3] : memref<32x128xbf16, #tpu.memory_space<vmem>>, vector<32x128xbf16>
    %c0_4 = arith.constant 0 : index
    %c0_5 = arith.constant 0 : index
    %5 = vector.load %arg4[%c0_4, %c0_5] : memref<128x128xbf16, #tpu.memory_space<vmem>>, vector<128x128xbf16>
    %cst = arith.constant dense<0.000000e+00> : vector<32x128xf32>
    %6 = tpu.matmul %4, %5, %cst {dimension_numbers = #tpu.dot_dimension_numbers<[1], [1], [0], [0], [0, 0, 1, 0], [], []>} : vector<32x128xbf16>, vector<128x128xbf16>, vector<32x128xf32> -> vector<32x128xf32>
    %7 = arith.addf %3, %6 : vector<32x128xf32>
    %c0_6 = arith.constant 0 : index
    %c0_7 = arith.constant 0 : index
    %8 = vector.load %arg7[%c0_6, %c0_7] : memref<32x128xf32, #tpu.memory_space<vmem>>, vector<32x128xf32>
    tpu.vector_store %arg7[%c0_6, %c0_7], %7 {strides = array<i32>} : memref<32x128xf32, #tpu.memory_space<vmem>>, vector<32x128xf32>,
    %c0_i32_8 = arith.constant 0 : i32
    %9 = arith.cmpi eq, %arg2, %c0_i32_8 : i32
    %10 = arith.extui %9 : i1 to i32
    %c0_i32_9 = arith.constant 0 : i32
    %11 = arith.cmpi ne, %10, %c0_i32_9 : i32
    scf.if %11 {
      %c0_10 = arith.constant 0 : index
      %c0_11 = arith.constant 0 : index
      %12 = vector.load %arg7[%c0_10, %c0_11] : memref<32x128xf32, #tpu.memory_space<vmem>>, vector<32x128xf32>
      %c0_12 = arith.constant 0 : index
      %c0_13 = arith.constant 0 : index
      %13 = vector.load %arg5[%c0_12, %c0_13] : memref<1x128xf32, #tpu.memory_space<vmem>>, vector<1x128xf32>
      %14 = vector.broadcast %13 : vector<1x128xf32> to vector<32x128xf32>
      %15 = arith.addf %12, %14 : vector<32x128xf32>
      %c0_14 = arith.constant 0 : index
      %c0_15 = arith.constant 0 : index
      %16 = vector.load %arg6[%c0_14, %c0_15] : memref<32x128xf32, #tpu.memory_space<vmem>>, vector<32x128xf32>
      tpu.vector_store %arg6[%c0_14, %c0_15], %15 {strides = array<i32>} : memref<32x128xf32, #tpu.memory_space<vmem>>, vector<32x128xf32>,
    } else {
    }
    return
  }
  func.func @transform_0(%arg0: i32, %arg1: i32, %arg2: i32) -> (i32, i32) {
    %c0_i32 = arith.constant 0 : i32
    return %arg0, %arg2 : i32, i32
  }
  func.func @transform_1(%arg0: i32, %arg1: i32, %arg2: i32) -> (i32, i32) {
    %c0_i32 = arith.constant 0 : i32
    return %arg1, %arg2 : i32, i32
  }
  func.func @transform_2(%arg0: i32, %arg1: i32, %arg2: i32) -> (i32, i32) {
    %c0_i32 = arith.constant 0 : i32
    %c0_i32_0 = arith.constant 0 : i32
    return %c0_i32, %arg1 : i32, i32
  }
  func.func @transform_3(%arg0: i32, %arg1: i32, %arg2: i32) -> (i32, i32) {
    %c0_i32 = arith.constant 0 : i32
    return %arg0, %arg1 : i32, i32
  }
}

</mosaic_0001>

<llo_original>
// kernel: tpu_custom_call.1
$region0: #{tpu_custom_call.1}
  #allocation0 [shape = 'u32[]', space=smem, size = 0x4, offset = 0x4, fixed_abs, tag = 'smem constant byte address 0x4 - core index']
  #allocation1 [shape = 'u32[144,128]{1,0:T(1,128)}', space=vmem, size = 0x12000, scoped, tag = 'internal scratch']
  #allocation2 [shape = 'f32[32,128]{1,0:T(8,128)}', space=vmem, size = 0x4000, scoped, tag = 'scratch operand']
  %s0 = inlined_call_operand.hbm [shape: bf16[32,128], index: 0, kind: input, shape index: {}]
  %s1 = inlined_call_operand.hbm [shape: bf16[128,128], index: 1, kind: input, shape index: {}]
  %s2 = inlined_call_operand.vmem [shape: f32[1,128], index: 2, kind: input, shape index: {}]
  %s3 = inlined_call_operand.hbm [shape: f32[32,128], index: 3, kind: output, shape index: {}]
  %s4 = sld [smem:[#allocation0]]
  $region38: #{tpu_custom_call.1} parent=0
    _
  %s6 = ssub.s32 1, %s4
  %s7 = scalar_select 0, %s6, %s4
  $region1: #{tpu_custom_call.1} parent=0
    #allocation3 [shape = 'u8[8192]{0}', space=vmem, size = 0x2000, scoped, tag = 'input window, operand 0, single buffered']
    #allocation4 [shape = 's32[1]{0}', space=sflag, size = 0x4, scoped, tag = 'scoped memory for tpu_custom_call.1']
    #allocation5 [shape = 's32[1]{0}', space=sflag, size = 0x4, scoped, tag = 'scoped memory for tpu_custom_call.1']
    #allocation6 [shape = 'u8[32768]{0}', space=vmem, size = 0x8000, scoped, tag = 'input window, operand 1, single buffered']
    #allocation7 [shape = 's32[1]{0}', space=sflag, size = 0x4, scoped, tag = 'scoped memory for tpu_custom_call.1']
    #allocation8 [shape = 'u8[16384]{0}', space=vmem, size = 0x4000, scoped, tag = 'output window, operand 0, single buffered']
    %8 = vsyncpa [#allocation4], 0
    %9 = vsyncpa [#allocation7], 0
    %10 = vsyncpa [#allocation5], 0
    // Predicated region
    $region2: #{tpu_custom_call.1} parent=1 // pred_check
      _
    $region3: #{tpu_custom_call.1} parent=1 // pred_check_branch
      %12 = sbr.rel (0) target = $region5
    $region4: #{tpu_custom_call.1} parent=1 // pred_region
      %s14 = ssub.s32 256, 256
      %15 = vsyncadd [#allocation4], %s14
      %s16 = sshll.u32 [#allocation3], 4
      %s17 = int_to_ptr.vmem [resolvable:$true] %s16
      %22 = dma.hbm_to_vmem [thread:$0]  %s0, 256, %s17, [#allocation4], 64, 64, 4
    $region5: #{tpu_custom_call.1} parent=1 // pred_fallthru
      _
    // Predicated region
    $region6: #{tpu_custom_call.1} parent=1 // pred_check
      _
    $region7: #{tpu_custom_call.1} parent=1 // pred_check_branch
      %24 = sbr.rel (0) target = $region9
    $region8: #{tpu_custom_call.1} parent=1 // pred_region
      %s26 = ssub.s32 1024, 1024
      %27 = vsyncadd [#allocation7], %s26
      %s28 = sshll.u32 [#allocation6], 4
      %s29 = int_to_ptr.vmem [resolvable:$true] %s28
      %34 = dma.hbm_to_vmem [thread:$0]  %s1, 1024, %s29, [#allocation7], 64, 64, 4
    $region9: #{tpu_custom_call.1} parent=1 // pred_fallthru
      _
    // Predicated region
    $region10: #{tpu_custom_call.1} parent=1 // pred_check
      _
    $region11: #{tpu_custom_call.1} parent=1 // pred_check_branch
      %36 = sbr.rel (0) target = $region13
    $region12: #{tpu_custom_call.1} parent=1 // pred_region
      _
    $region13: #{tpu_custom_call.1} parent=1 // pred_fallthru
      _
    // Predicated region
    $region14: #{tpu_custom_call.1} parent=1 // pred_check
      _
    $region15: #{tpu_custom_call.1} parent=1 // pred_check_branch
      %38 = sbr.rel (0) target = $region17
    $region16: #{tpu_custom_call.1} parent=1 // pred_region
      %39 = dma.done [#allocation4], 256
    $region17: #{tpu_custom_call.1} parent=1 // pred_fallthru
      _
    // Predicated region
    $region18: #{tpu_custom_call.1} parent=1 // pred_check
      _
    $region19: #{tpu_custom_call.1} parent=1 // pred_check_branch
      %41 = sbr.rel (0) target = $region21
    $region20: #{tpu_custom_call.1} parent=1 // pred_region
      %42 = dma.done [#allocation7], 1024
    $region21: #{tpu_custom_call.1} parent=1 // pred_fallthru
      _
    %p44 = scmp.eq.s32.totalorder 0, 0
    // Predicated region
    $region22: #{tpu_custom_call.1} parent=1 // pred_check
      %p45 = pneg %p44
    $region23: #{tpu_custom_call.1} parent=1 // pred_check_branch
      %47 = sbr.rel (%p45) target = $region25
    $region24: #{tpu_custom_call.1} parent=1 // pred_region
      %48 = vst [vmem:[#allocation2] sm:$0xff] 0.0
      %49 = vst [vmem:[#allocation2 + $0x8] sm:$0xff] 0.0
      %50 = vst [vmem:[#allocation2 + $0x10] sm:$0xff] 0.0
      %51 = vst [vmem:[#allocation2 + $0x18] sm:$0xff] 0.0
    $region25: #{tpu_custom_call.1} parent=1 // pred_fallthru
      _
    %v52 = vld [vmem:[#allocation2] sm:$0xff]
    %v53 = vld [vmem:[#allocation2 + $0x8] sm:$0xff]
    %v54 = vld [vmem:[#allocation2 + $0x10] sm:$0xff]
    %v55 = vld [vmem:[#allocation2 + $0x18] sm:$0xff]
    %v56 = vld [vmem:[#allocation3] sm:$0xf]
    %v57 = vld [vmem:[#allocation3 + $0x4] sm:$0xf]
    %v58 = vld [vmem:[#allocation3 + $0x8] sm:$0xf]
    %v59 = vld [vmem:[#allocation3 + $0xc] sm:$0xf]
    %v60 = vld [vmem:[#allocation6] sm:$0xf]
    %v61 = vld [vmem:[#allocation6 + $0x4] sm:$0xf]
    %v62 = vld [vmem:[#allocation6 + $0x8] sm:$0xf]
    %v63 = vld [vmem:[#allocation6 + $0xc] sm:$0xf]
    %v64 = vld [vmem:[#allocation6 + $0x10] sm:$0xf]
    %v65 = vld [vmem:[#allocation6 + $0x14] sm:$0xf]
    %v66 = vld [vmem:[#allocation6 + $0x18] sm:$0xf]
    %v67 = vld [vmem:[#allocation6 + $0x1c] sm:$0xf]
    %v68 = vld [vmem:[#allocation6 + $0x20] sm:$0xf]
    %v69 = vld [vmem:[#allocation6 + $0x24] sm:$0xf]
    %v70 = vld [vmem:[#allocation6 + $0x28] sm:$0xf]
    %v71 = vld [vmem:[#allocation6 + $0x2c] sm:$0xf]
    %v72 = vld [vmem:[#allocation6 + $0x30] sm:$0xf]
    %v73 = vld [vmem:[#allocation6 + $0x34] sm:$0xf]
    %v74 = vld [vmem:[#allocation6 + $0x38] sm:$0xf]
    %v75 = vld [vmem:[#allocation6 + $0x3c] sm:$0xf]
    %v80 = vunpack.c.l.b16 %v56
    %v81 = vunpack.c.l.b16 %v57
    %v82 = vunpack.c.l.b16 %v58
    %v83 = vunpack.c.l.b16 %v59
    %v84 = vpack.c.b16 %v81, %v80
    %v85 = vpack.c.b16 %v83, %v82
    %v104 = vunpack.c.l.b16 %v60
    %v105 = vunpack.c.l.b16 %v61
    %v106 = vunpack.c.l.b16 %v62
    %v107 = vunpack.c.l.b16 %v63
    %v108 = vunpack.c.l.b16 %v64
    %v109 = vunpack.c.l.b16 %v65
    %v110 = vunpack.c.l.b16 %v66
    %v111 = vunpack.c.l.b16 %v67
    %v112 = vunpack.c.l.b16 %v68
    %v113 = vunpack.c.l.b16 %v69
    %v114 = vunpack.c.l.b16 %v70
    %v115 = vunpack.c.l.b16 %v71
    %v116 = vunpack.c.l.b16 %v72
    %v117 = vunpack.c.l.b16 %v73
    %v118 = vunpack.c.l.b16 %v74
    %v119 = vunpack.c.l.b16 %v75
    %v120 = vpack.c.b16 %v105, %v104
    %v121 = vpack.c.b16 %v107, %v106
    %v122 = vpack.c.b16 %v109, %v108
    %v123 = vpack.c.b16 %v111, %v110
    %v124 = vpack.c.b16 %v113, %v112
    %v125 = vpack.c.b16 %v115, %v114
    %v126 = vpack.c.b16 %v117, %v116
    %v127 = vpack.c.b16 %v119, %v118
    %136 = vmatprep.subr.bf16.mxu0 0
    %137 = vmatpush1.bf16.xpose.msra.mxu0 %v120
    %138 = vmatprep.subr.bf16.mxu0 0
    %139 = vmatpush1.bf16.xpose.msra.mxu0 %v121
    %140 = vmatprep.subr.bf16.mxu0 0
    %141 = vmatpush1.bf16.xpose.msra.mxu0 %v122
    %142 = vmatprep.subr.bf16.mxu0 0
    %143 = vmatpush1.bf16.xpose.msra.mxu0 %v123
    %144 = vmatprep.subr.bf16.mxu0 0
    %145 = vmatpush1.bf16.xpose.msra.mxu0 %v124
    %146 = vmatprep.subr.bf16.mxu0 0
    %147 = vmatpush1.bf16.xpose.msra.mxu0 %v125
    %148 = vmatprep.subr.bf16.mxu0 0
    %149 = vmatpush1.bf16.xpose.msra.mxu0 %v126
    %150 = vmatprep.subr.bf16.mxu0 0
    %151 = vmatpush1.bf16.xpose.msra.mxu0 %v127
    %152 = vmatprep.subr.bf16.mxu0 0
    %153 = vmatpush1.bf16.xpose.msra.mxu0 0
    %154 = vmatprep.subr.bf16.mxu0 0
    %155 = vmatpush1.bf16.xpose.msra.mxu0 0
    %156 = vmatprep.subr.bf16.mxu0 0
    %157 = vmatpush1.bf16.xpose.msra.mxu0 0
    %158 = vmatprep.subr.bf16.mxu0 0
    %159 = vmatpush1.bf16.xpose.msra.mxu0 0
    %160 = vmatprep.subr.bf16.mxu0 0
    %161 = vmatpush1.bf16.xpose.msra.mxu0 0
    %162 = vmatprep.subr.bf16.mxu0 0
    %163 = vmatpush1.bf16.xpose.msra.mxu0 0
    %164 = vmatprep.subr.bf16.mxu0 0
    %165 = vmatpush1.bf16.xpose.msra.mxu0 0
    %166 = vmatprep.subr.bf16.mxu0 0
    %167 = vmatpush1.bf16.xpose.msra.mxu0 0
    %168 = vmatprep.mubr.bf16.mxu0 0
    %169 = vmatmul.mubr.bf16.gmra.mrb[0].mxu0 %v84
    %v170 = vpop.f32.mrb[0].mxu0
    %v171 = vadd.f32 0.0, %v170
    %v172 = vpop.f32.mrb[0].mxu0
    %v173 = vpop.f32.mrb[0].mxu0
    %v174 = vadd.f32 0.0, %v173
    %v175 = vpop.f32.mrb[0].mxu0
    %176 = vmatprep.mubr.bf16.mxu0 0
    %177 = vmatmul.mubr.bf16.gmra.mrb[0].mxu0 %v85
    %v178 = vpop.f32.mrb[0].mxu0
    %v179 = vadd.f32 0.0, %v178
    %v180 = vpop.f32.mrb[0].mxu0
    %v181 = vpop.f32.mrb[0].mxu0
    %v182 = vadd.f32 0.0, %v181
    %v183 = vpop.f32.mrb[0].mxu0
    %184 = vdwg.mxu0
    %v185 = vadd.f32 %v52, %v171
    %v186 = vadd.f32 %v53, %v174
    %v187 = vadd.f32 %v54, %v179
    %v188 = vadd.f32 %v55, %v182
    %189 = vst [vmem:[#allocation2] sm:$0xff] %v185
    %190 = vst [vmem:[#allocation2 + $0x8] sm:$0xff] %v186
    %191 = vst [vmem:[#allocation2 + $0x10] sm:$0xff] %v187
    %192 = vst [vmem:[#allocation2 + $0x18] sm:$0xff] %v188
    // Predicated region
    $region26: #{tpu_custom_call.1} parent=1 // pred_check
      %p193 = pneg %p44
    $region27: #{tpu_custom_call.1} parent=1 // pred_check_branch
      %195 = sbr.rel (%p193) target = $region29
    $region28: #{tpu_custom_call.1} parent=1 // pred_region
      %v196 = vld [vmem:[#allocation2] sm:$0xff]
      %v197 = vld [vmem:[#allocation2 + $0x8] sm:$0xff]
      %v198 = vld [vmem:[#allocation2 + $0x10] sm:$0xff]
      %v199 = vld [vmem:[#allocation2 + $0x18] sm:$0xff]
      %v200 = vld [vmem:[%s2] sm:$0x1]
      %v202 = vlaneseq
      %v203 = vshrl.u32 %v202, 7
      %v204 = vsub.s32 0, %v203
      %v205 = vrot.slane %v200, %v204
      %v207 = vadd.f32 %v196, %v205
      %v208 = vadd.f32 %v197, %v205
      %v209 = vadd.f32 %v198, %v205
      %v210 = vadd.f32 %v199, %v205
      %211 = vst [vmem:[#allocation8] sm:$0xff] %v207
      %212 = vst [vmem:[#allocation8 + $0x8] sm:$0xff] %v208
      %213 = vst [vmem:[#allocation8 + $0x10] sm:$0xff] %v209
      %214 = vst [vmem:[#allocation8 + $0x18] sm:$0xff] %v210
    $region29: #{tpu_custom_call.1} parent=1 // pred_fallthru
      _
    // Predicated region
    $region30: #{tpu_custom_call.1} parent=1 // pred_check
      _
    $region31: #{tpu_custom_call.1} parent=1 // pred_check_branch
      %216 = sbr.rel (0) target = $region33
    $region32: #{tpu_custom_call.1} parent=1 // pred_region
      %s218 = ssub.s32 512, 512
      %219 = vsyncadd [#allocation5], %s218
      %s220 = sshll.u32 [#allocation8], 4
      %s221 = int_to_ptr.vmem [resolvable:$true] %s220
      %226 = dma.vmem_to_hbm [thread:$0]  %s221, 512, %s3, [#allocation5], 128, 128, 8
    $region33: #{tpu_custom_call.1} parent=1 // pred_fallthru
      _
    // Predicated region
    $region34: #{tpu_custom_call.1} parent=1 // pred_check
      _
    $region35: #{tpu_custom_call.1} parent=1 // pred_check_branch
      %228 = sbr.rel (0) target = $region37
    $region36: #{tpu_custom_call.1} parent=1 // pred_region
      %229 = dma.done [#allocation5], 512
    $region37: #{tpu_custom_call.1} parent=1 // pred_fallthru
      _
    %230 = vsyncpa [#allocation4], 1
    %231 = vsyncpa [#allocation7], 1
    %232 = vsyncpa [#allocation5], 1

</llo_original>
